<compile_context>
chip_gen: v7x
topology: tpu7x:2x2x1
jax: 0.10.0
libtpu: 0.0.40
codegen_flags: <defaults>
</compile_context>

<pallas_src>
import functools

import jax
import jax.numpy as jnp
from jax.experimental import pallas as pl
from jax.experimental.pallas import tpu as pltpu


def _round_up(n: int, m: int) -> int:
    return (n + m - 1) // m * m


def _gated_fusion_kernel(x_gate: bool, dim: int, out_dim: int, slab_w: int,
                         x_ref, y_ref, wx_ref, bx_ref, wy_ref, by_ref,
                         wo_ref, bo_ref, out_ref):
    """One batch tile: fc_x, fc_y, gate, fc_out -> packed compact slab.

    x_ref, y_ref : (TM, K)       f32   raw activations (no wrapper staging)
    wx/wy_ref    : (K, dim)      bf16  VMEM-resident weights
    bx/by_ref    : (1, dim)      f32
    wo_ref       : (dim, out_dim) bf16
    bo_ref       : (1, out_dim)  f32
    out_ref      : (TM, slab_w)  f32   [out_x | out_y | output | 0-pad]
    """
    bf16 = jnp.bfloat16

    # Input projections: bf16 MXU operands, f32 accumulation.  Two small dots
    # (never more MXU work than a block-diagonal fusion would be).
    out_x = jnp.dot(x_ref[...].astype(bf16), wx_ref[...],
                    preferred_element_type=jnp.float32) + bx_ref[...]
    out_y = jnp.dot(y_ref[...].astype(bf16), wy_ref[...],
                    preferred_element_type=jnp.float32) + by_ref[...]

    # Gating entirely in f32 (important on v5e: no bf16 VPU/EUP).
    if x_gate:
        fused = jax.nn.sigmoid(out_x) * out_y
    else:
        fused = out_x * jax.nn.sigmoid(out_y)

    # Output projection.
    out = jnp.dot(fused.astype(bf16), wo_ref[...],
                  preferred_element_type=jnp.float32) + bo_ref[...]

    # Packed compact slab.  The per-result slice stores are sub-128-lane
    # masked VMEM stores (cheap); the HBM writeback of the whole block stays a
    # single unmasked 128-lane-aligned DMA.
    out_ref[:, 0:dim] = out_x
    out_ref[:, dim:2 * dim] = out_y
    out_ref[:, 2 * dim:2 * dim + out_dim] = out
    pad = slab_w - (2 * dim + out_dim)
    if pad:  # keep the padded lanes deterministic
        out_ref[:, 2 * dim + out_dim:] = jnp.zeros(
            (out_x.shape[0], pad), out_ref.dtype)


def gated_fusion(x, y, params, *, x_gate: bool = True, block_m: int = 512):
    """Pallas-fused forward pass. Returns (out_x, out_y, output), f32."""
    wx, bx, wy, by, wo, bo = (params["wx"], params["bx"], params["wy"],
                              params["by"], params["wo"], params["bo"])
    batch, k = x.shape
    dim = wx.shape[1]
    out_dim = wo.shape[1]

    # Compact, lane-dense output slab: [out_x | out_y | output | pad].
    slab_w = _round_up(2 * dim + out_dim, 128)

    # Batch tile: big (roofline) but capped at ceil(batch/2) so the grid has
    # >= 2 steps and both v7x TensorCores get work; always a multiple of 8
    # (or the full batch when batch < 8) to satisfy the (8,128) rule.
    if batch < 8:
        tm = batch
    else:
        tm = min(_round_up(block_m, 8), _round_up(pl.cdiv(batch, 2), 8))
        tm = max(tm, 8)
    grid_m = pl.cdiv(batch, tm)   # ragged last block handled by masked writeback

    bf16 = jnp.bfloat16
    wx_b, wy_b, wo_b = wx.astype(bf16), wy.astype(bf16), wo.astype(bf16)

    flops = 2 * batch * (2 * k * dim + dim * out_dim)
    bytes_accessed = (
        2 * batch * k * 4                      # x, y (f32 reads)
        + (2 * k * dim + dim * out_dim) * 2    # bf16 weights
        + (2 * dim + out_dim) * 4              # f32 biases
        + batch * slab_w * 4                   # output slab writeback
    )
    cost = pl.CostEstimate(flops=flops, transcendentals=batch * dim,
                           bytes_accessed=bytes_accessed)

    kernel = functools.partial(_gated_fusion_kernel, x_gate, dim, out_dim,
                               slab_w)

    out_slab = pl.pallas_call(
        kernel,
        out_shape=jax.ShapeDtypeStruct((batch, slab_w), jnp.float32),
        grid=(grid_m,),
        in_specs=[
            pl.BlockSpec((tm, k), lambda i: (i, 0)),          # x: tiled over batch
            pl.BlockSpec((tm, k), lambda i: (i, 0)),          # y: tiled over batch
            pl.BlockSpec((k, dim), lambda i: (0, 0)),         # weights/biases:
            pl.BlockSpec((1, dim), lambda i: (0, 0)),         #   VMEM-resident
            pl.BlockSpec((k, dim), lambda i: (0, 0)),
            pl.BlockSpec((1, dim), lambda i: (0, 0)),
            pl.BlockSpec((dim, out_dim), lambda i: (0, 0)),
            pl.BlockSpec((1, out_dim), lambda i: (0, 0)),
        ],
        out_specs=pl.BlockSpec((tm, slab_w), lambda i: (i, 0)),
        compiler_params=pltpu.CompilerParams(
            dimension_semantics=("parallel",),   # shard batch over 2 TCs on v7x
            vmem_limit_bytes=32 * 1024 * 1024,
        ),
        cost_estimate=cost,
    )(x, y, wx_b, bx, wy_b, by, wo_b, bo)

    # TODO(synk): if only `output` is consumed (or the consumer can take the
    # packed slab directly), return the slab / drop out_x & out_y to avoid the
    # strided unpack copies and cut writeback further.
    out_x = out_slab[:, :dim]
    out_y = out_slab[:, dim:2 * dim]
    output = out_slab[:, 2 * dim:2 * dim + out_dim]
    return out_x, out_y, output


def init_params(key, input_dim, dim, output_dim):
    """Deterministic parameter init (uniform, PyTorch-Linear-like fan-in scale)."""
    ks = jax.random.split(key, 6)

    def lin(kw, kb, fan_in, fan_out):
        bound = 1.0 / jnp.sqrt(fan_in)
        w = jax.random.uniform(kw, (fan_in, fan_out), jnp.float32, -bound, bound)
        b = jax.random.uniform(kb, (1, fan_out), jnp.float32, -bound, bound)
        return w, b

    wx, bx = lin(ks[0], ks[1], input_dim, dim)
    wy, by = lin(ks[2], ks[3], input_dim, dim)
    wo, bo = lin(ks[4], ks[5], dim, output_dim)
    return {"wx": wx, "bx": bx, "wy": wy, "by": by, "wo": wo, "bo": bo}


def gated_fusion_ref(x, y, params, *, x_gate: bool = True, quantize: bool = True):
    """Plain-JAX reference matching the PyTorch forward.

    With quantize=True the MXU operands are bf16-quantized exactly like the
    kernel, so the comparison isolates kernel logic from bf16 rounding.
    """
    def q(a):
        return a.astype(jnp.bfloat16).astype(jnp.float32) if quantize else a

    out_x = q(x) @ q(params["wx"]) + params["bx"]
    out_y = q(y) @ q(params["wy"]) + params["by"]
    if x_gate:
        fused = jax.nn.sigmoid(out_x) * out_y
    else:
        fused = out_x * jax.nn.sigmoid(out_y)
    output = q(fused) @ q(params["wo"]) + params["bo"]
    return out_x, out_y, output


if __name__ == "__main__":
    # args.fusion_input_dim = 32, args.fusion_output_dim = 16
    batch, input_dim, output_dim = 8, 32, 16

    key = jax.random.PRNGKey(0)
    kx, ky, kp = jax.random.split(key, 3)
    x = jax.random.normal(kx, (batch, input_dim), jnp.float32)
    y = jax.random.normal(ky, (batch, input_dim), jnp.float32)
    params = init_params(kp, input_dim, input_dim, output_dim)

    for x_gate in (True, False):
        out_x, out_y, output = jax.block_until_ready(
            gated_fusion(x, y, params, x_gate=x_gate))

        # Tight check vs. bf16-quantized reference (same MXU operand precision).
        r_out_x, r_out_y, r_output = gated_fusion_ref(
            x, y, params, x_gate=x_gate, quantize=True)
        assert jnp.allclose(out_x, r_out_x, atol=1e-3, rtol=1e-3)
        assert jnp.allclose(out_y, r_out_y, atol=1e-3, rtol=1e-3)
        assert jnp.allclose(output, r_output, atol=1e-3, rtol=1e-3)

        # Loose sanity check vs. full-f32 reference (bf16 quantization noise only).
        f_out_x, f_out_y, f_output = gated_fusion_ref(
            x, y, params, x_gate=x_gate, quantize=False)
        assert jnp.allclose(out_x, f_out_x, atol=1e-1, rtol=1e-1)
        assert jnp.allclose(out_y, f_out_y, atol=1e-1, rtol=1e-1)
        assert jnp.allclose(output, f_output, atol=1e-1, rtol=1e-1)

    print("KERNEL_OK")
</pallas_src>

<mosaic_0001>
module attributes {stable_mosaic.version = 11 : i64} {
  func.func @_gated_fusion_kernel(%arg0: i32, %arg1: memref<8x32xf32, #tpu.memory_space<vmem>>, %arg2: memref<8x32xf32, #tpu.memory_space<vmem>>, %arg3: memref<32x32xbf16, #tpu.memory_space<vmem>>, %arg4: memref<1x32xf32, #tpu.memory_space<vmem>>, %arg5: memref<32x32xbf16, #tpu.memory_space<vmem>>, %arg6: memref<1x32xf32, #tpu.memory_space<vmem>>, %arg7: memref<32x16xbf16, #tpu.memory_space<vmem>>, %arg8: memref<1x16xf32, #tpu.memory_space<vmem>>, %arg9: memref<8x128xf32, #tpu.memory_space<vmem>>) attributes {dimension_semantics = [#tpu.dimension_semantics<parallel>], iteration_bounds = array<i64: 1>, scalar_prefetch = 0 : i64, scratch_operands = 0 : i64, tpu.core_type = #tpu.core_type<tc>, window_params = [{transform_indices = @transform_0, window_bounds = array<i64: 8, 32>}, {transform_indices = @transform_1, window_bounds = array<i64: 8, 32>}, {pipeline_mode = #tpu.pipeline_mode<synchronous>, transform_indices = @transform_2, window_bounds = array<i64: 32, 32>}, {pipeline_mode = #tpu.pipeline_mode<synchronous>, transform_indices = @transform_3, window_bounds = array<i64: 1, 32>}, {pipeline_mode = #tpu.pipeline_mode<synchronous>, transform_indices = @transform_4, window_bounds = array<i64: 32, 32>}, {pipeline_mode = #tpu.pipeline_mode<synchronous>, transform_indices = @transform_5, window_bounds = array<i64: 1, 32>}, {pipeline_mode = #tpu.pipeline_mode<synchronous>, transform_indices = @transform_6, window_bounds = array<i64: 32, 16>}, {pipeline_mode = #tpu.pipeline_mode<synchronous>, transform_indices = @transform_7, window_bounds = array<i64: 1, 16>}, {transform_indices = @transform_8, window_bounds = array<i64: 8, 128>}]} {
    %c0 = arith.constant 0 : index
    %c0_0 = arith.constant 0 : index
    %0 = vector.load %arg1[%c0, %c0_0] : memref<8x32xf32, #tpu.memory_space<vmem>>, vector<8x32xf32>
    %1 = arith.truncf %0 : vector<8x32xf32> to vector<8x32xbf16>
    %c0_1 = arith.constant 0 : index
    %c0_2 = arith.constant 0 : index
    %2 = vector.load %arg3[%c0_1, %c0_2] : memref<32x32xbf16, #tpu.memory_space<vmem>>, vector<32x32xbf16>
    %cst = arith.constant dense<0.000000e+00> : vector<8x32xf32>
    %3 = tpu.matmul %1, %2, %cst {dimension_numbers = #tpu.dot_dimension_numbers<[1], [0], [0], [1], [0, 0, 1, 1], [], []>} : vector<8x32xbf16>, vector<32x32xbf16>, vector<8x32xf32> -> vector<8x32xf32>
    %c0_3 = arith.constant 0 : index
    %c0_4 = arith.constant 0 : index
    %4 = vector.load %arg4[%c0_3, %c0_4] : memref<1x32xf32, #tpu.memory_space<vmem>>, vector<1x32xf32>
    %5 = vector.broadcast %4 : vector<1x32xf32> to vector<8x32xf32>
    %6 = arith.addf %3, %5 : vector<8x32xf32>
    %c0_5 = arith.constant 0 : index
    %c0_6 = arith.constant 0 : index
    %7 = vector.load %arg2[%c0_5, %c0_6] : memref<8x32xf32, #tpu.memory_space<vmem>>, vector<8x32xf32>
    %8 = arith.truncf %7 : vector<8x32xf32> to vector<8x32xbf16>
    %c0_7 = arith.constant 0 : index
    %c0_8 = arith.constant 0 : index
    %9 = vector.load %arg5[%c0_7, %c0_8] : memref<32x32xbf16, #tpu.memory_space<vmem>>, vector<32x32xbf16>
    %cst_9 = arith.constant dense<0.000000e+00> : vector<8x32xf32>
    %10 = tpu.matmul %8, %9, %cst_9 {dimension_numbers = #tpu.dot_dimension_numbers<[1], [0], [0], [1], [0, 0, 1, 1], [], []>} : vector<8x32xbf16>, vector<32x32xbf16>, vector<8x32xf32> -> vector<8x32xf32>
    %c0_10 = arith.constant 0 : index
    %c0_11 = arith.constant 0 : index
    %11 = vector.load %arg6[%c0_10, %c0_11] : memref<1x32xf32, #tpu.memory_space<vmem>>, vector<1x32xf32>
    %12 = vector.broadcast %11 : vector<1x32xf32> to vector<8x32xf32>
    %13 = arith.addf %10, %12 : vector<8x32xf32>
    %14 = arith.negf %6 : vector<8x32xf32>
    %15 = math.exp %14 : vector<8x32xf32>
    %cst_12 = arith.constant 1.000000e+00 : f32
    %16 = vector.broadcast %cst_12 : f32 to vector<8x32xf32>
    %17 = arith.addf %16, %15 : vector<8x32xf32>
    %18 = arith.divf %16, %17 : vector<8x32xf32>
    %19 = arith.mulf %18, %13 : vector<8x32xf32>
    %20 = arith.truncf %19 : vector<8x32xf32> to vector<8x32xbf16>
    %c0_13 = arith.constant 0 : index
    %c0_14 = arith.constant 0 : index
    %21 = vector.load %arg7[%c0_13, %c0_14] : memref<32x16xbf16, #tpu.memory_space<vmem>>, vector<32x16xbf16>
    %cst_15 = arith.constant dense<0.000000e+00> : vector<8x16xf32>
    %22 = tpu.matmul %20, %21, %cst_15 {dimension_numbers = #tpu.dot_dimension_numbers<[1], [0], [0], [1], [0, 0, 1, 1], [], []>} : vector<8x32xbf16>, vector<32x16xbf16>, vector<8x16xf32> -> vector<8x16xf32>
    %c0_16 = arith.constant 0 : index
    %c0_17 = arith.constant 0 : index
    %23 = vector.load %arg8[%c0_16, %c0_17] : memref<1x16xf32, #tpu.memory_space<vmem>>, vector<1x16xf32>
    %24 = vector.broadcast %23 : vector<1x16xf32> to vector<8x16xf32>
    %25 = arith.addf %22, %24 : vector<8x16xf32>
    %c0_18 = arith.constant 0 : index
    %c0_19 = arith.constant 0 : index
    %26 = vector.load %arg9[%c0_18, %c0_19] : memref<8x128xf32, #tpu.memory_space<vmem>>, vector<8x32xf32>
    tpu.vector_store %arg9[%c0_18, %c0_19], %6 {strides = array<i32>} : memref<8x128xf32, #tpu.memory_space<vmem>>, vector<8x32xf32>,
    %c0_20 = arith.constant 0 : index
    %c32 = arith.constant 32 : index
    %27 = vector.load %arg9[%c0_20, %c32] : memref<8x128xf32, #tpu.memory_space<vmem>>, vector<8x32xf32>
    tpu.vector_store %arg9[%c0_20, %c32], %13 {strides = array<i32>} : memref<8x128xf32, #tpu.memory_space<vmem>>, vector<8x32xf32>,
    %c0_21 = arith.constant 0 : index
    %c64 = arith.constant 64 : index
    %28 = vector.load %arg9[%c0_21, %c64] : memref<8x128xf32, #tpu.memory_space<vmem>>, vector<8x16xf32>
    tpu.vector_store %arg9[%c0_21, %c64], %25 {strides = array<i32>} : memref<8x128xf32, #tpu.memory_space<vmem>>, vector<8x16xf32>,
    %cst_22 = arith.constant 0.000000e+00 : f32
    %29 = vector.broadcast %cst_22 : f32 to vector<8x48xf32>
    %c0_23 = arith.constant 0 : index
    %c80 = arith.constant 80 : index
    %30 = vector.load %arg9[%c0_23, %c80] : memref<8x128xf32, #tpu.memory_space<vmem>>, vector<8x48xf32>
    tpu.vector_store %arg9[%c0_23, %c80], %29 {strides = array<i32>} : memref<8x128xf32, #tpu.memory_space<vmem>>, vector<8x48xf32>,
    return
  }
  func.func @transform_0(%arg0: i32) -> (i32, i32) {
    %c0_i32 = arith.constant 0 : i32
    %c0_i32_0 = arith.constant 0 : i32
    return %arg0, %c0_i32 : i32, i32
  }
  func.func @transform_1(%arg0: i32) -> (i32, i32) {
    %c0_i32 = arith.constant 0 : i32
    %c0_i32_0 = arith.constant 0 : i32
    return %arg0, %c0_i32 : i32, i32
  }
  func.func @transform_2(%arg0: i32) -> (i32, i32) {
    %c0_i32 = arith.constant 0 : i32
    %c0_i32_0 = arith.constant 0 : i32
    %c0_i32_1 = arith.constant 0 : i32
    return %c0_i32, %c0_i32_0 : i32, i32
  }
  func.func @transform_3(%arg0: i32) -> (i32, i32) {
    %c0_i32 = arith.constant 0 : i32
    %c0_i32_0 = arith.constant 0 : i32
    %c0_i32_1 = arith.constant 0 : i32
    return %c0_i32, %c0_i32_0 : i32, i32
  }
  func.func @transform_4(%arg0: i32) -> (i32, i32) {
    %c0_i32 = arith.constant 0 : i32
    %c0_i32_0 = arith.constant 0 : i32
    %c0_i32_1 = arith.constant 0 : i32
    return %c0_i32, %c0_i32_0 : i32, i32
  }
  func.func @transform_5(%arg0: i32) -> (i32, i32) {
    %c0_i32 = arith.constant 0 : i32
    %c0_i32_0 = arith.constant 0 : i32
    %c0_i32_1 = arith.constant 0 : i32
    return %c0_i32, %c0_i32_0 : i32, i32
  }
  func.func @transform_6(%arg0: i32) -> (i32, i32) {
    %c0_i32 = arith.constant 0 : i32
    %c0_i32_0 = arith.constant 0 : i32
    %c0_i32_1 = arith.constant 0 : i32
    return %c0_i32, %c0_i32_0 : i32, i32
  }
  func.func @transform_7(%arg0: i32) -> (i32, i32) {
    %c0_i32 = arith.constant 0 : i32
    %c0_i32_0 = arith.constant 0 : i32
    %c0_i32_1 = arith.constant 0 : i32
    return %c0_i32, %c0_i32_0 : i32, i32
  }
  func.func @transform_8(%arg0: i32) -> (i32, i32) {
    %c0_i32 = arith.constant 0 : i32
    %c0_i32_0 = arith.constant 0 : i32
    return %arg0, %c0_i32 : i32, i32
  }
}

</mosaic_0001>

<llo_original>
// kernel: tpu_custom_call.1
$region0: #{tpu_custom_call.1}
  #allocation0 [shape = 'u32[]', space=smem, size = 0x4, offset = 0x4, fixed_abs, tag = 'smem constant byte address 0x4 - core index']
  #allocation1 [shape = 'u32[144,128]{1,0:T(1,128)}', space=vmem, size = 0x12000, scoped, tag = 'internal scratch']
  %s0 = inlined_call_operand.hbm [shape: f32[8,32], index: 0, kind: input, shape index: {}]
  %s1 = inlined_call_operand.hbm [shape: f32[8,32], index: 1, kind: input, shape index: {}]
  %s2 = inlined_call_operand.vmem [shape: bf16[32,32], index: 2, kind: input, shape index: {}]
  %s3 = inlined_call_operand.vmem [shape: f32[1,32], index: 3, kind: input, shape index: {}]
  %s4 = inlined_call_operand.vmem [shape: bf16[32,32], index: 4, kind: input, shape index: {}]
  %s5 = inlined_call_operand.vmem [shape: f32[1,32], index: 5, kind: input, shape index: {}]
  %s6 = inlined_call_operand.vmem [shape: bf16[32,16], index: 6, kind: input, shape index: {}]
  %s7 = inlined_call_operand.vmem [shape: f32[1,16], index: 7, kind: input, shape index: {}]
  %s8 = inlined_call_operand.hbm [shape: f32[8,128], index: 8, kind: output, shape index: {}]
  %s9 = sld [smem:[#allocation0]]
  $region50: #{tpu_custom_call.1} parent=0
    _
  %s11 = ssub.s32 1, %s9
  %s12 = scalar_select 0, %s11, %s9
  $region1: #{tpu_custom_call.1} parent=0
    #allocation2 [shape = 'u8[4096]{0}', space=vmem, size = 0x1000, scoped, tag = 'input window, operand 0, single buffered']
    #allocation3 [shape = 's32[1]{0}', space=sflag, size = 0x4, scoped, tag = 'scoped memory for tpu_custom_call.1']
    #allocation4 [shape = 's32[1]{0}', space=sflag, size = 0x4, scoped, tag = 'scoped memory for tpu_custom_call.1']
    #allocation5 [shape = 'u8[4096]{0}', space=vmem, size = 0x1000, scoped, tag = 'input window, operand 1, single buffered']
    #allocation6 [shape = 's32[1]{0}', space=sflag, size = 0x4, scoped, tag = 'scoped memory for tpu_custom_call.1']
    #allocation7 [shape = 'u8[4096]{0}', space=vmem, size = 0x1000, scoped, tag = 'output window, operand 0, single buffered']
    %13 = vsyncpa [#allocation3], 0
    %14 = vsyncpa [#allocation6], 0
    %15 = vsyncpa [#allocation4], 0
    // Predicated region
    $region2: #{tpu_custom_call.1} parent=1 // pred_check
      _
    $region3: #{tpu_custom_call.1} parent=1 // pred_check_branch
      %17 = sbr.rel (0) target = $region5
    $region4: #{tpu_custom_call.1} parent=1 // pred_region
      %s19 = ssub.s32 128, 128
      %20 = vsyncadd [#allocation3], %s19
      %s22 = sshll.u32 [#allocation2], 4
      %s23 = int_to_ptr.vmem [resolvable:$true] %s22
      %25 = dma.hbm_to_vmem [thread:$0]  %s0, 128, %s23, [#allocation3]
    $region5: #{tpu_custom_call.1} parent=1 // pred_fallthru
      _
    // Predicated region
    $region6: #{tpu_custom_call.1} parent=1 // pred_check
      _
    $region7: #{tpu_custom_call.1} parent=1 // pred_check_branch
      %27 = sbr.rel (0) target = $region9
    $region8: #{tpu_custom_call.1} parent=1 // pred_region
      %s29 = ssub.s32 128, 128
      %30 = vsyncadd [#allocation6], %s29
      %s32 = sshll.u32 [#allocation5], 4
      %s33 = int_to_ptr.vmem [resolvable:$true] %s32
      %35 = dma.hbm_to_vmem [thread:$0]  %s1, 128, %s33, [#allocation6]
    $region9: #{tpu_custom_call.1} parent=1 // pred_fallthru
      _
    // Predicated region
    $region10: #{tpu_custom_call.1} parent=1 // pred_check
      _
    $region11: #{tpu_custom_call.1} parent=1 // pred_check_branch
      %37 = sbr.rel (0) target = $region13
    $region12: #{tpu_custom_call.1} parent=1 // pred_region
      _
    $region13: #{tpu_custom_call.1} parent=1 // pred_fallthru
      _
    // Predicated region
    $region14: #{tpu_custom_call.1} parent=1 // pred_check
      _
    $region15: #{tpu_custom_call.1} parent=1 // pred_check_branch
      %39 = sbr.rel (0) target = $region17
    $region16: #{tpu_custom_call.1} parent=1 // pred_region
      _
    $region17: #{tpu_custom_call.1} parent=1 // pred_fallthru
      _
    // Predicated region
    $region18: #{tpu_custom_call.1} parent=1 // pred_check
      _
    $region19: #{tpu_custom_call.1} parent=1 // pred_check_branch
      %41 = sbr.rel (0) target = $region21
    $region20: #{tpu_custom_call.1} parent=1 // pred_region
      _
    $region21: #{tpu_custom_call.1} parent=1 // pred_fallthru
      _
    // Predicated region
    $region22: #{tpu_custom_call.1} parent=1 // pred_check
      _
    $region23: #{tpu_custom_call.1} parent=1 // pred_check_branch
      %43 = sbr.rel (0) target = $region25
    $region24: #{tpu_custom_call.1} parent=1 // pred_region
      _
    $region25: #{tpu_custom_call.1} parent=1 // pred_fallthru
      _
    // Predicated region
    $region26: #{tpu_custom_call.1} parent=1 // pred_check
      _
    $region27: #{tpu_custom_call.1} parent=1 // pred_check_branch
      %45 = sbr.rel (0) target = $region29
    $region28: #{tpu_custom_call.1} parent=1 // pred_region
      _
    $region29: #{tpu_custom_call.1} parent=1 // pred_fallthru
      _
    // Predicated region
    $region30: #{tpu_custom_call.1} parent=1 // pred_check
      _
    $region31: #{tpu_custom_call.1} parent=1 // pred_check_branch
      %47 = sbr.rel (0) target = $region33
    $region32: #{tpu_custom_call.1} parent=1 // pred_region
      _
    $region33: #{tpu_custom_call.1} parent=1 // pred_fallthru
      _
    // Predicated region
    $region34: #{tpu_custom_call.1} parent=1 // pred_check
      _
    $region35: #{tpu_custom_call.1} parent=1 // pred_check_branch
      %49 = sbr.rel (0) target = $region37
    $region36: #{tpu_custom_call.1} parent=1 // pred_region
      %50 = dma.done [#allocation3], 128
    $region37: #{tpu_custom_call.1} parent=1 // pred_fallthru
      _
    // Predicated region
    $region38: #{tpu_custom_call.1} parent=1 // pred_check
      _
    $region39: #{tpu_custom_call.1} parent=1 // pred_check_branch
      %52 = sbr.rel (0) target = $region41
    $region40: #{tpu_custom_call.1} parent=1 // pred_region
      %53 = dma.done [#allocation6], 128
    $region41: #{tpu_custom_call.1} parent=1 // pred_fallthru
      _
    %v55 = vld [vmem:[#allocation2] sm:$0xff]
    %v56 = vpack.c.bf16 %v55, %v55
    %v57 = vld [vmem:[%s2] sm:$0xf]
    %v58 = vld [vmem:[%s2 + $0x4] sm:$0xf]
    %v59 = vld [vmem:[%s2 + $0x8] sm:$0xf]
    %v60 = vld [vmem:[%s2 + $0xc] sm:$0xf]
    %v61 = vld [vmem:[%s3] sm:$0x1]
    %v63 = vlaneseq
    %v64 = vshrl.u32 %v63, 7
    %v65 = vsub.s32 0, %v64
    %v66 = vrot.slane %v61, %v65
    %v72 = vunpack.c.l.b16 %v57
    %v73 = vunpack.c.l.b16 %v58
    %v74 = vunpack.c.l.b16 %v59
    %v75 = vunpack.c.l.b16 %v60
    %v76 = vpack.c.b16 %v73, %v72
    %v77 = vpack.c.b16 %v75, %v74
    %vm80 = vcmask 261120
    %v82 = vsel %vm80, %v56, 0
    %84 = vmatprep.subr.bf16.mxu0 0
    %85 = vmatpush1.bf16.msra.mxu0 %v76
    %86 = vmatprep.subr.bf16.mxu0 0
    %87 = vmatpush1.bf16.msra.mxu0 %v77
    %88 = vmatprep.subr.bf16.mxu0 0
    %89 = vmatpush1.bf16.msra.mxu0 0
    %90 = vmatprep.subr.bf16.mxu0 0
    %91 = vmatpush1.bf16.msra.mxu0 0
    %92 = vmatprep.subr.bf16.mxu0 0
    %93 = vmatpush1.bf16.msra.mxu0 0
    %94 = vmatprep.subr.bf16.mxu0 0
    %95 = vmatpush1.bf16.msra.mxu0 0
    %96 = vmatprep.subr.bf16.mxu0 0
    %97 = vmatpush1.bf16.msra.mxu0 0
    %98 = vmatprep.subr.bf16.mxu0 0
    %99 = vmatpush1.bf16.msra.mxu0 0
    %100 = vmatprep.subr.bf16.mxu0 0
    %101 = vmatpush1.bf16.msra.mxu0 0
    %102 = vmatprep.subr.bf16.mxu0 0
    %103 = vmatpush1.bf16.msra.mxu0 0
    %104 = vmatprep.subr.bf16.mxu0 0
    %105 = vmatpush1.bf16.msra.mxu0 0
    %106 = vmatprep.subr.bf16.mxu0 0
    %107 = vmatpush1.bf16.msra.mxu0 0
    %108 = vmatprep.subr.bf16.mxu0 0
    %109 = vmatpush1.bf16.msra.mxu0 0
    %110 = vmatprep.subr.bf16.mxu0 0
    %111 = vmatpush1.bf16.msra.mxu0 0
    %112 = vmatprep.subr.bf16.mxu0 0
    %113 = vmatpush1.bf16.msra.mxu0 0
    %114 = vmatprep.subr.bf16.mxu0 0
    %115 = vmatpush1.bf16.msra.mxu0 0
    %116 = vmatprep.mubr.bf16.mxu0 0
    %117 = vmatmul.mubr.bf16.gmra.mrb[0].mxu0 %v82
    %v118 = vpop.f32.mrb[0].mxu0
    %v119 = vadd.f32 %v66, %v118
    %v120 = vpop.f32.mrb[0].mxu0
    %v121 = vpop.f32.mrb[0].mxu0
    %v122 = vpop.f32.mrb[0].mxu0
    %123 = vdwg.mxu0
    %v124 = vld [vmem:[#allocation5] sm:$0xff]
    %v125 = vpack.c.bf16 %v124, %v124
    %v126 = vld [vmem:[%s4] sm:$0xf]
    %v127 = vld [vmem:[%s4 + $0x4] sm:$0xf]
    %v128 = vld [vmem:[%s4 + $0x8] sm:$0xf]
    %v129 = vld [vmem:[%s4 + $0xc] sm:$0xf]
    %v130 = vld [vmem:[%s5] sm:$0x1]
    %v132 = vlaneseq
    %v133 = vshrl.u32 %v132, 7
    %v134 = vsub.s32 0, %v133
    %v135 = vrot.slane %v130, %v134
    %v141 = vunpack.c.l.b16 %v126
    %v142 = vunpack.c.l.b16 %v127
    %v143 = vunpack.c.l.b16 %v128
    %v144 = vunpack.c.l.b16 %v129
    %v145 = vpack.c.b16 %v142, %v141
    %v146 = vpack.c.b16 %v144, %v143
    %v150 = vsel %vm80, %v125, 0
    %152 = vmatprep.subr.bf16.mxu0 0
    %153 = vmatpush1.bf16.msra.mxu0 %v145
    %154 = vmatprep.subr.bf16.mxu0 0
    %155 = vmatpush1.bf16.msra.mxu0 %v146
    %156 = vmatprep.subr.bf16.mxu0 0
    %157 = vmatpush1.bf16.msra.mxu0 0
    %158 = vmatprep.subr.bf16.mxu0 0
    %159 = vmatpush1.bf16.msra.mxu0 0
    %160 = vmatprep.subr.bf16.mxu0 0
    %161 = vmatpush1.bf16.msra.mxu0 0
    %162 = vmatprep.subr.bf16.mxu0 0
    %163 = vmatpush1.bf16.msra.mxu0 0
    %164 = vmatprep.subr.bf16.mxu0 0
    %165 = vmatpush1.bf16.msra.mxu0 0
    %166 = vmatprep.subr.bf16.mxu0 0
    %167 = vmatpush1.bf16.msra.mxu0 0
    %168 = vmatprep.subr.bf16.mxu0 0
    %169 = vmatpush1.bf16.msra.mxu0 0
    %170 = vmatprep.subr.bf16.mxu0 0
    %171 = vmatpush1.bf16.msra.mxu0 0
    %172 = vmatprep.subr.bf16.mxu0 0
    %173 = vmatpush1.bf16.msra.mxu0 0
    %174 = vmatprep.subr.bf16.mxu0 0
    %175 = vmatpush1.bf16.msra.mxu0 0
    %176 = vmatprep.subr.bf16.mxu0 0
    %177 = vmatpush1.bf16.msra.mxu0 0
    %178 = vmatprep.subr.bf16.mxu0 0
    %179 = vmatpush1.bf16.msra.mxu0 0
    %180 = vmatprep.subr.bf16.mxu0 0
    %181 = vmatpush1.bf16.msra.mxu0 0
    %182 = vmatprep.subr.bf16.mxu0 0
    %183 = vmatpush1.bf16.msra.mxu0 0
    %184 = vmatprep.mubr.bf16.mxu0 0
    %185 = vmatmul.mubr.bf16.gmra.mrb[0].mxu0 %v150
    %v186 = vpop.f32.mrb[0].mxu0
    %v187 = vadd.f32 %v135, %v186
    %v188 = vpop.f32.mrb[0].mxu0
    %v189 = vpop.f32.mrb[0].mxu0
    %v190 = vpop.f32.mrb[0].mxu0
    %191 = vdwg.mxu0
    %v192 = vxor.u32 %v119, 2147483648
    %v193 = vmul.f32 %v192, 1.442695
    %v194 = vpow.pop %v193
    %v195 = vadd.f32 %v194, 1.0
    %v196 = vrcp.pop %v195
    %v197 = vmul.f32 1.0, %v196
    %v198 = vmul.f32 %v197, %v187
    %v199 = vpack.c.bf16 %v198, %v198
    %v200 = vld [vmem:[%s6] sm:$0xf]
    %v201 = vld [vmem:[%s6 + $0x4] sm:$0xf]
    %v202 = vld [vmem:[%s6 + $0x8] sm:$0xf]
    %v203 = vld [vmem:[%s6 + $0xc] sm:$0xf]
    %v204 = vld [vmem:[%s7] sm:$0x1]
    %v206 = vlaneseq
    %v207 = vshrl.u32 %v206, 7
    %v208 = vsub.s32 0, %v207
    %v209 = vrot.slane %v204, %v208
    %v215 = vunpack.c.l.b16 %v200
    %v216 = vunpack.c.l.b16 %v201
    %v217 = vunpack.c.l.b16 %v202
    %v218 = vunpack.c.l.b16 %v203
    %v219 = vpack.c.b16 %v216, %v215
    %v220 = vpack.c.b16 %v218, %v217
    %v224 = vsel %vm80, %v199, 0
    %226 = vmatprep.subr.bf16.mxu0 0
    %227 = vmatpush1.bf16.msra.mxu0 %v219
    %228 = vmatprep.subr.bf16.mxu0 0
    %229 = vmatpush1.bf16.msra.mxu0 %v220
    %230 = vmatprep.subr.bf16.mxu0 0
    %231 = vmatpush1.bf16.msra.mxu0 0
    %232 = vmatprep.subr.bf16.mxu0 0
    %233 = vmatpush1.bf16.msra.mxu0 0
    %234 = vmatprep.subr.bf16.mxu0 0
    %235 = vmatpush1.bf16.msra.mxu0 0
    %236 = vmatprep.subr.bf16.mxu0 0
    %237 = vmatpush1.bf16.msra.mxu0 0
    %238 = vmatprep.subr.bf16.mxu0 0
    %239 = vmatpush1.bf16.msra.mxu0 0
    %240 = vmatprep.subr.bf16.mxu0 0
    %241 = vmatpush1.bf16.msra.mxu0 0
    %242 = vmatprep.subr.bf16.mxu0 0
    %243 = vmatpush1.bf16.msra.mxu0 0
    %244 = vmatprep.subr.bf16.mxu0 0
    %245 = vmatpush1.bf16.msra.mxu0 0
    %246 = vmatprep.subr.bf16.mxu0 0
    %247 = vmatpush1.bf16.msra.mxu0 0
    %248 = vmatprep.subr.bf16.mxu0 0
    %249 = vmatpush1.bf16.msra.mxu0 0
    %250 = vmatprep.subr.bf16.mxu0 0
    %251 = vmatpush1.bf16.msra.mxu0 0
    %252 = vmatprep.subr.bf16.mxu0 0
    %253 = vmatpush1.bf16.msra.mxu0 0
    %254 = vmatprep.subr.bf16.mxu0 0
    %255 = vmatpush1.bf16.msra.mxu0 0
    %256 = vmatprep.subr.bf16.mxu0 0
    %257 = vmatpush1.bf16.msra.mxu0 0
    %258 = vmatprep.mubr.bf16.mxu0 0
    %259 = vmatmul.mubr.bf16.gmra.mrb[0].mxu0 %v224
    %v260 = vpop.f32.mrb[0].mxu0
    %v261 = vadd.f32 %v209, %v260
    %v262 = vpop.f32.mrb[0].mxu0
    %v263 = vpop.f32.mrb[0].mxu0
    %v264 = vpop.f32.mrb[0].mxu0
    %265 = vdwg.mxu0
    %266 = vst.msk [vmem:[#allocation7] sm:$0xff] %vm80, %v119
    %268 = vrot.lane.b32.xlu0 %v187, 32
    %v269 = vpop.permute.xlu0 %268
    %vm271 = vcmask 523520
    %272 = vst.msk [vmem:[#allocation7] sm:$0xff] %vm271, %v269
    %274 = vrot.lane.b32.xlu0 %v261, 64
    %v275 = vpop.permute.xlu0 %274
    %vm277 = vcmask 654848
    %278 = vst.msk [vmem:[#allocation7] sm:$0xff] %vm277, %v275
    %vm279 = vcmask 1048192
    %280 = vst.msk [vmem:[#allocation7] sm:$0xff] %vm279, 0.0
    // Predicated region
    $region42: #{tpu_custom_call.1} parent=1 // pred_check
      _
    $region43: #{tpu_custom_call.1} parent=1 // pred_check_branch
      %282 = sbr.rel (0) target = $region45
    $region44: #{tpu_custom_call.1} parent=1 // pred_region
      %s284 = ssub.s32 128, 128
      %285 = vsyncadd [#allocation4], %s284
      %s287 = sshll.u32 [#allocation7], 4
      %s288 = int_to_ptr.vmem [resolvable:$true] %s287
      %290 = dma.vmem_to_hbm [thread:$0]  %s288, 128, %s8, [#allocation4]
    $region45: #{tpu_custom_call.1} parent=1 // pred_fallthru
      _
    // Predicated region
    $region46: #{tpu_custom_call.1} parent=1 // pred_check
      _
    $region47: #{tpu_custom_call.1} parent=1 // pred_check_branch
      %292 = sbr.rel (0) target = $region49
    $region48: #{tpu_custom_call.1} parent=1 // pred_region
      %293 = dma.done [#allocation4], 128
    $region49: #{tpu_custom_call.1} parent=1 // pred_fallthru
      _
    %294 = vsyncpa [#allocation3], 1
    %295 = vsyncpa [#allocation6], 1
    %296 = vsyncpa [#allocation4], 1

</llo_original>
